<compile_context>
chip_gen: v5e
topology: v5e:2x2
jax: 0.10.0
libtpu: 0.0.40
codegen_flags: <defaults>
</compile_context>

<pallas_src>
import functools

import jax
import jax.numpy as jnp
import numpy as np
from jax.experimental import pallas as pl
from jax.experimental.pallas import tpu as pltpu

EPS = 1e-5
K_PARTIAL = 4  # PC-DARTS partial-channel factor k


# ------------------------- static tap tables (host) ------------------------ #
def _mask_and_shift_tables(H, W, lt):
    """Factored boundary masks (5+5 rows, lt lanes) + per-tap roll shifts.

    The dilated-5x5 validity mask factorizes into a vertical term (depends on
    the row offset rv and h) and a horizontal term (rh and w), so only
    (10, Lt) of mask data is needed instead of (25, L).
    """
    HW = H * W
    q = np.arange(lt) % HW
    hh = q // W
    ww = q % W
    mv = np.zeros((5, lt), np.float32)
    mh = np.zeros((5, lt), np.float32)
    h_shifts, v_shifts = [], []
    for j in range(5):
        rh = 2 * j - 4                       # horizontal offset (dil=2, pad=4)
        mh[j] = ((ww + rh >= 0) & (ww + rh < W)).astype(np.float32)
        h_shifts.append(int((-rh) % lt))     # roll(x, k)[q] == x[(q + rh) % lt]
    for i in range(5):
        rv = 2 * i - 4                       # vertical offset
        mv[i] = ((hh + rv >= 0) & (hh + rv < H)).astype(np.float32)
        v_shifts.append(int((-(rv * W)) % lt))
    return mv, mh, tuple(h_shifts), tuple(v_shifts)


# ----------------------------- Pallas kernel ------------------------------- #
def _dilconv5x5_pw_bn_kernel(xp_ref, xfull_ref, mv_ref, mh_ref, dwt_ref,
                             pwp_ref, alpha_ref, out_ref,
                             ybuf_ref, s1_ref, s2_ref, *,
                             h_shifts, v_shifts, inv_count, cp, lt, eps):
    """One lane-tile of: ReLU -> dw dilated 5x5 -> pw 1x1 (MXU) -> BN*alpha,
    plus bypass copy-through into the concatenated output slab.

    xp_ref   : (Cr, Lt) f32 processed channels (rows padded to 8), lane-dense
    xfull_ref: (C,  Lt) f32 full input slab (rows [:Cp] are placeholders,
                             rows [Cp:] are the bypass channels)
    mv_ref   : (5, Lt)  f32 vertical boundary masks
    mh_ref   : (5, Lt)  f32 horizontal boundary masks
    dwt_ref  : (Cr, 25) f32 depthwise taps per channel
    pwp_ref  : (Cr, Cr) f32 pointwise weight (zero-padded rows/cols)
    alpha_ref: (1, 1)   f32 architecture weight w[0]
    out_ref  : (C, L)   f32 resident output block (concat order: proc, bypass)
    ybuf_ref : (Cr, L)  f32 scratch, unnormalized pointwise output
    s1/s2_ref: (Cr, 1)  f32 scratch, BN partial sums
    """
    t = pl.program_id(0)
    nt = pl.num_programs(0)
    lo = pl.multiple_of(t * lt, lt)

    @pl.when(t == 0)
    def _init():
        s1_ref[...] = jnp.zeros_like(s1_ref)
        s2_ref[...] = jnp.zeros_like(s2_ref)

    # ReLU first (DilConv = ReLU -> convs -> BN).
    xr = jnp.maximum(xp_ref[...], 0.0)

    # --- depthwise dilated 5x5, separable rolls -----------------------------
    # Stage 1: horizontal taps (lane roll by rh, masked per column offset).
    xh = []
    for j, sh in enumerate(h_shifts):
        rolled = pltpu.roll(xr, shift=sh, axis=1) if sh else xr
        xh.append(rolled * mh_ref[j:j + 1, :])

    # Stage 2: per vertical offset, scale by the per-channel tap weight, sum
    # over j (independent accumulators, tree adds), then one vertical roll and
    # the vertical boundary mask.  Per-channel scales commute with lane rolls,
    # so only 4 vertical rolls are needed in total.
    parts = []
    for i, sv in enumerate(v_shifts):
        terms = [xh[j] * dwt_ref[:, i * 5 + j:i * 5 + j + 1] for j in range(5)]
        inner = (terms[0] + terms[1]) + (terms[2] + terms[3]) + terms[4]
        rolled = pltpu.roll(inner, shift=sv, axis=1) if sv else inner
        parts.append(rolled * mv_ref[i:i + 1, :])
    acc = (parts[0] + parts[1]) + (parts[2] + parts[3]) + parts[4]

    # --- pointwise 1x1 conv: one MXU contraction over channels --------------
    y = jnp.dot(pwp_ref[...], acc, preferred_element_type=jnp.float32)

    # Stash unnormalized activations; accumulate BN partial sums.
    ybuf_ref[:, pl.ds(lo, lt)] = y
    s1_ref[...] += jnp.sum(y, axis=1, keepdims=True)
    s2_ref[...] += jnp.sum(y * y, axis=1, keepdims=True)

    # Bypass copy-through into the concatenated output slab.  Full-height
    # aligned store; rows [:Cp] are placeholders overwritten at finalize.
    out_ref[:, pl.ds(lo, lt)] = xfull_ref[...]

    # --- BN finalize (training stats, affine=False), alpha folded in --------
    @pl.when(t == nt - 1)
    def _finalize():
        mean = s1_ref[...] * inv_count
        # NOTE: single-pass E[y^2]-E[y]^2; fine at this scale/tolerance.
        var = s2_ref[...] * inv_count - mean * mean
        scale = alpha_ref[...] * jax.lax.rsqrt(var + eps)       # (Cr, 1)
        norm = (ybuf_ref[...] - mean) * scale                   # (Cr, L)
        out_ref[pl.ds(0, cp), :] = norm[:cp, :]


# ------------------------------- JAX glue ---------------------------------- #
def mixed_op_pcdarts_forward(x, arch_weights, params, k=K_PARTIAL,
                             images_per_tile=1):
    """MixedOpPCDarts.forward (stride=1 branch) with the single mixed-op op."""
    N, C, H, W = x.shape
    Cp = C // k
    HW = H * W
    L = N * HW
    Cr = ((Cp + 7) // 8) * 8                 # channel rows padded to 8 sublanes

    # Lane-tile size: whole images only (keeps rolls/masks tile-local).  At
    # realistic sizes pick the largest whole-image multiple that fits the
    # scoped VMEM budget (halve on v7x's 64 MiB); here 1 image/tile exercises
    # the gridded BN-carry path.
    if N % images_per_tile != 0 or (images_per_tile * HW) % 128 != 0:
        images_per_tile = N                  # single-tile fallback
    Lt = images_per_tile * HW
    T = L // Lt

    # Lane-dense slabs: row = channel, lane = n*H*W + h*W + w.
    x2 = x.astype(jnp.float32).transpose(1, 0, 2, 3).reshape(C, L)
    xp = jnp.pad(x2[:Cp], ((0, Cr - Cp), (0, 0)))                  # (Cr, L)

    dwt = jnp.pad(params["dw"].reshape(Cp, 25).astype(jnp.float32),
                  ((0, Cr - Cp), (0, 0)))                          # (Cr, 25)
    pwp = jnp.zeros((Cr, Cr), jnp.float32).at[:Cp, :Cp].set(
        params["pw"].reshape(Cp, Cp).astype(jnp.float32))          # (Cr, Cr)
    alpha = jnp.reshape(arch_weights[0], (1, 1)).astype(jnp.float32)

    mv_np, mh_np, h_shifts, v_shifts = _mask_and_shift_tables(H, W, Lt)
    mv = jnp.asarray(mv_np)                                        # (5, Lt)
    mh = jnp.asarray(mh_np)                                        # (5, Lt)

    kernel = functools.partial(
        _dilconv5x5_pw_bn_kernel,
        h_shifts=h_shifts, v_shifts=v_shifts,
        inv_count=1.0 / float(N * HW), cp=Cp, lt=Lt, eps=EPS)

    grid_spec = pltpu.PrefetchScalarGridSpec(
        num_scalar_prefetch=0,
        grid=(T,),
        in_specs=[
            pl.BlockSpec((Cr, Lt), lambda i: (0, i)),   # xp (processed, padded)
            pl.BlockSpec((C, Lt), lambda i: (0, i)),    # xfull (bypass rows)
            pl.BlockSpec((5, Lt), lambda i: (0, 0)),    # mv
            pl.BlockSpec((5, Lt), lambda i: (0, 0)),    # mh
            pl.BlockSpec((Cr, 25), lambda i: (0, 0)),   # dwt
            pl.BlockSpec((Cr, Cr), lambda i: (0, 0)),   # pwp
            pl.BlockSpec((1, 1), lambda i: (0, 0)),     # alpha
        ],
        out_specs=pl.BlockSpec((C, L), lambda i: (0, 0)),  # resident output
        scratch_shapes=[
            pltpu.VMEM((Cr, L), jnp.float32),           # unnormalized y
            pltpu.VMEM((Cr, 1), jnp.float32),           # BN sum
            pltpu.VMEM((Cr, 1), jnp.float32),           # BN sum of squares
        ],
    )

    flops = 2 * Cr * Cr * L + 65 * Cr * L
    bytes_accessed = 4 * (Cr * L + C * L + 10 * Lt + Cr * 25 + Cr * Cr + 1
                          + C * L)

    out2 = pl.pallas_call(
        kernel,
        out_shape=jax.ShapeDtypeStruct((C, L), jnp.float32),
        grid_spec=grid_spec,
        compiler_params=pltpu.CompilerParams(
            dimension_semantics=("arbitrary",)),        # BN carry + resident out
        cost_estimate=pl.CostEstimate(flops=flops, transcendentals=Cr,
                                      bytes_accessed=bytes_accessed),
    )(xp, x2, mv, mh, dwt, pwp, alpha)

    # out2 is already [processed ; bypass] in concat order and lane-dense, so
    # concat + channel_shuffle + NCHW collapse into one reshape/transpose.
    return out2.reshape(k, Cp, N, H, W).transpose(2, 1, 0, 3, 4).reshape(
        N, C, H, W)


# ------------------------------ pure-JAX ref -------------------------------- #
def channel_shuffle(x, groups):
    n, c, h, w = x.shape
    x = x.reshape(n, groups, c // groups, h, w)
    x = jnp.transpose(x, (0, 2, 1, 3, 4))
    return x.reshape(n, -1, h, w)


def _ref_forward(x, arch_weights, dw, pw, k=K_PARTIAL):
    C = x.shape[1]
    Cp = C // k
    xp, xb = x[:, :Cp], x[:, Cp:]
    N, _, H, W = xp.shape
    xr = jnp.maximum(xp, 0.0)
    xpad = jnp.pad(xr, ((0, 0), (0, 0), (4, 4), (4, 4)))
    d = jnp.zeros((N, Cp, H, W), jnp.float32)
    for i in range(5):
        for j in range(5):
            d = d + xpad[:, :, 2 * i:2 * i + H, 2 * j:2 * j + W] * \
                dw[:, 0, i, j][None, :, None, None]
    y = jnp.einsum("oc,nchw->nohw", pw[:, :, 0, 0], d)
    mean = y.mean(axis=(0, 2, 3), keepdims=True)
    var = ((y - mean) ** 2).mean(axis=(0, 2, 3), keepdims=True)
    y = (y - mean) / jnp.sqrt(var + EPS)
    out_process = arch_weights[0] * y
    out = jnp.concatenate([out_process, xb], axis=1)
    return channel_shuffle(out, k)


# --------------------------------- main ------------------------------------ #
if __name__ == "__main__":
    key = jax.random.PRNGKey(0)
    k_x, k_dw, k_pw, k_a = jax.random.split(key, 4)

    N, C, H, W = 2, 16, 16, 16              # C must be divisible by k=4
    Cp = C // K_PARTIAL

    x = jax.random.normal(k_x, (N, C, H, W), dtype=jnp.float32)
    # PyTorch param shapes: depthwise Conv2d(Cp, Cp, 5, groups=Cp) -> (Cp,1,5,5)
    #                       pointwise Conv2d(Cp, Cp, 1)            -> (Cp,Cp,1,1)
    dw_w = 0.1 * jax.random.normal(k_dw, (Cp, 1, 5, 5), dtype=jnp.float32)
    pw_w = 0.1 * jax.random.normal(k_pw, (Cp, Cp, 1, 1), dtype=jnp.float32)
    # Architecture weights (softmax over 8 DARTS primitives); only [0] is used.
    arch_weights = jax.nn.softmax(jax.random.normal(k_a, (8,), dtype=jnp.float32))

    params = {"dw": dw_w, "pw": pw_w}

    out = mixed_op_pcdarts_forward(x, arch_weights, params)
    out = jax.block_until_ready(out)

    ref = _ref_forward(x, arch_weights, dw_w, pw_w)
    # Tolerance covers the MXU's default f32 matmul precision in the 1x1
    # contraction; structural/indexing bugs would show up as O(1) mismatches.
    np.testing.assert_allclose(np.asarray(out), np.asarray(ref),
                               rtol=1e-2, atol=1e-2)
    assert out.shape == (N, C, H, W)
    print("KERNEL_OK")
</pallas_src>

<mosaic_0001>
module attributes {stable_mosaic.version = 11 : i64} {
  func.func @_dilconv5x5_pw_bn_kernel(%arg0: i32, %arg1: memref<8x256xf32, #tpu.memory_space<vmem>>, %arg2: memref<16x256xf32, #tpu.memory_space<vmem>>, %arg3: memref<5x256xf32, #tpu.memory_space<vmem>>, %arg4: memref<5x256xf32, #tpu.memory_space<vmem>>, %arg5: memref<8x25xf32, #tpu.memory_space<vmem>>, %arg6: memref<8x8xf32, #tpu.memory_space<vmem>>, %arg7: memref<1x1xf32, #tpu.memory_space<vmem>>, %arg8: memref<16x512xf32, #tpu.memory_space<vmem>>, %arg9: memref<8x512xf32, #tpu.memory_space<vmem>>, %arg10: memref<8x1xf32, #tpu.memory_space<vmem>>, %arg11: memref<8x1xf32, #tpu.memory_space<vmem>>) attributes {dimension_semantics = [#tpu.dimension_semantics<arbitrary>], iteration_bounds = array<i64: 2>, scalar_prefetch = 0 : i64, scratch_operands = 3 : i64, tpu.core_type = #tpu.core_type<tc>, window_params = [{transform_indices = @transform_0, window_bounds = array<i64: 8, 256>}, {transform_indices = @transform_1, window_bounds = array<i64: 16, 256>}, {pipeline_mode = #tpu.pipeline_mode<synchronous>, transform_indices = @transform_2, window_bounds = array<i64: 5, 256>}, {pipeline_mode = #tpu.pipeline_mode<synchronous>, transform_indices = @transform_3, window_bounds = array<i64: 5, 256>}, {pipeline_mode = #tpu.pipeline_mode<synchronous>, transform_indices = @transform_4, window_bounds = array<i64: 8, 25>}, {pipeline_mode = #tpu.pipeline_mode<synchronous>, transform_indices = @transform_5, window_bounds = array<i64: 8, 8>}, {pipeline_mode = #tpu.pipeline_mode<synchronous>, transform_indices = @transform_6, window_bounds = array<i64: 1, 1>}, {pipeline_mode = #tpu.pipeline_mode<synchronous>, transform_indices = @transform_7, window_bounds = array<i64: 16, 512>}]} {
    %c256_i32 = arith.constant 256 : i32
    %0 = arith.muli %arg0, %c256_i32 : i32
    %1 = tpu.assume_multiple %0, 256 : i32
    %c0_i32 = arith.constant 0 : i32
    %2 = arith.cmpi eq, %arg0, %c0_i32 : i32
    %3 = arith.extui %2 : i1 to i32
    %c0_i32_0 = arith.constant 0 : i32
    %4 = arith.cmpi ne, %3, %c0_i32_0 : i32
    scf.if %4 {
      %cst_66 = arith.constant 0.000000e+00 : f32
      %166 = vector.broadcast %cst_66 : f32 to vector<8x1xf32>
      %c0_67 = arith.constant 0 : index
      %c0_68 = arith.constant 0 : index
      %167 = vector.load %arg10[%c0_67, %c0_68] : memref<8x1xf32, #tpu.memory_space<vmem>>, vector<8x1xf32>
      tpu.vector_store %arg10[%c0_67, %c0_68], %166 {strides = array<i32>} : memref<8x1xf32, #tpu.memory_space<vmem>>, vector<8x1xf32>,
      %cst_69 = arith.constant 0.000000e+00 : f32
      %168 = vector.broadcast %cst_69 : f32 to vector<8x1xf32>
      %c0_70 = arith.constant 0 : index
      %c0_71 = arith.constant 0 : index
      %169 = vector.load %arg11[%c0_70, %c0_71] : memref<8x1xf32, #tpu.memory_space<vmem>>, vector<8x1xf32>
      tpu.vector_store %arg11[%c0_70, %c0_71], %168 {strides = array<i32>} : memref<8x1xf32, #tpu.memory_space<vmem>>, vector<8x1xf32>,
    } else {
    }
    %c0 = arith.constant 0 : index
    %c0_1 = arith.constant 0 : index
    %5 = vector.load %arg1[%c0, %c0_1] : memref<8x256xf32, #tpu.memory_space<vmem>>, vector<8x256xf32>
    %cst = arith.constant 0.000000e+00 : f32
    %6 = vector.broadcast %cst : f32 to vector<8x256xf32>
    %7 = arith.maximumf %5, %6 : vector<8x256xf32>
    %c4_i32 = arith.constant 4 : i32
    %8 = tpu.dynamic_rotate %7 by %c4_i32 dim 1 : vector<8x256xf32>, i32 -> vector<8x256xf32>
    %c0_2 = arith.constant 0 : index
    %c0_3 = arith.constant 0 : index
    %9 = vector.load %arg4[%c0_2, %c0_3] : memref<5x256xf32, #tpu.memory_space<vmem>>, vector<1x256xf32>
    %10 = vector.broadcast %9 : vector<1x256xf32> to vector<8x256xf32>
    %11 = arith.mulf %8, %10 : vector<8x256xf32>
    %c2_i32 = arith.constant 2 : i32
    %12 = tpu.dynamic_rotate %7 by %c2_i32 dim 1 : vector<8x256xf32>, i32 -> vector<8x256xf32>
    %c1 = arith.constant 1 : index
    %c0_4 = arith.constant 0 : index
    %13 = vector.load %arg4[%c1, %c0_4] : memref<5x256xf32, #tpu.memory_space<vmem>>, vector<1x256xf32>
    %14 = vector.broadcast %13 : vector<1x256xf32> to vector<8x256xf32>
    %15 = arith.mulf %12, %14 : vector<8x256xf32>
    %c2 = arith.constant 2 : index
    %c0_5 = arith.constant 0 : index
    %16 = vector.load %arg4[%c2, %c0_5] : memref<5x256xf32, #tpu.memory_space<vmem>>, vector<1x256xf32>
    %17 = vector.broadcast %16 : vector<1x256xf32> to vector<8x256xf32>
    %18 = arith.mulf %7, %17 : vector<8x256xf32>
    %c254_i32 = arith.constant 254 : i32
    %19 = tpu.dynamic_rotate %7 by %c254_i32 dim 1 : vector<8x256xf32>, i32 -> vector<8x256xf32>
    %c3 = arith.constant 3 : index
    %c0_6 = arith.constant 0 : index
    %20 = vector.load %arg4[%c3, %c0_6] : memref<5x256xf32, #tpu.memory_space<vmem>>, vector<1x256xf32>
    %21 = vector.broadcast %20 : vector<1x256xf32> to vector<8x256xf32>
    %22 = arith.mulf %19, %21 : vector<8x256xf32>
    %c252_i32 = arith.constant 252 : i32
    %23 = tpu.dynamic_rotate %7 by %c252_i32 dim 1 : vector<8x256xf32>, i32 -> vector<8x256xf32>
    %c4 = arith.constant 4 : index
    %c0_7 = arith.constant 0 : index
    %24 = vector.load %arg4[%c4, %c0_7] : memref<5x256xf32, #tpu.memory_space<vmem>>, vector<1x256xf32>
    %25 = vector.broadcast %24 : vector<1x256xf32> to vector<8x256xf32>
    %26 = arith.mulf %23, %25 : vector<8x256xf32>
    %c0_8 = arith.constant 0 : index
    %c0_9 = arith.constant 0 : index
    %27 = vector.load %arg5[%c0_8, %c0_9] : memref<8x25xf32, #tpu.memory_space<vmem>>, vector<8x1xf32>
    %28 = vector.broadcast %27 : vector<8x1xf32> to vector<8x256xf32>
    %29 = arith.mulf %11, %28 : vector<8x256xf32>
    %c0_10 = arith.constant 0 : index
    %c1_11 = arith.constant 1 : index
    %30 = vector.load %arg5[%c0_10, %c1_11] : memref<8x25xf32, #tpu.memory_space<vmem>>, vector<8x1xf32>
    %31 = vector.broadcast %30 : vector<8x1xf32> to vector<8x256xf32>
    %32 = arith.mulf %15, %31 : vector<8x256xf32>
    %c0_12 = arith.constant 0 : index
    %c2_13 = arith.constant 2 : index
    %33 = vector.load %arg5[%c0_12, %c2_13] : memref<8x25xf32, #tpu.memory_space<vmem>>, vector<8x1xf32>
    %34 = vector.broadcast %33 : vector<8x1xf32> to vector<8x256xf32>
    %35 = arith.mulf %18, %34 : vector<8x256xf32>
    %c0_14 = arith.constant 0 : index
    %c3_15 = arith.constant 3 : index
    %36 = vector.load %arg5[%c0_14, %c3_15] : memref<8x25xf32, #tpu.memory_space<vmem>>, vector<8x1xf32>
    %37 = vector.broadcast %36 : vector<8x1xf32> to vector<8x256xf32>
    %38 = arith.mulf %22, %37 : vector<8x256xf32>
    %c0_16 = arith.constant 0 : index
    %c4_17 = arith.constant 4 : index
    %39 = vector.load %arg5[%c0_16, %c4_17] : memref<8x25xf32, #tpu.memory_space<vmem>>, vector<8x1xf32>
    %40 = vector.broadcast %39 : vector<8x1xf32> to vector<8x256xf32>
    %41 = arith.mulf %26, %40 : vector<8x256xf32>
    %42 = arith.addf %29, %32 : vector<8x256xf32>
    %43 = arith.addf %35, %38 : vector<8x256xf32>
    %44 = arith.addf %42, %43 : vector<8x256xf32>
    %45 = arith.addf %44, %41 : vector<8x256xf32>
    %c64_i32 = arith.constant 64 : i32
    %46 = tpu.dynamic_rotate %45 by %c64_i32 dim 1 : vector<8x256xf32>, i32 -> vector<8x256xf32>
    %c0_18 = arith.constant 0 : index
    %c0_19 = arith.constant 0 : index
    %47 = vector.load %arg3[%c0_18, %c0_19] : memref<5x256xf32, #tpu.memory_space<vmem>>, vector<1x256xf32>
    %48 = vector.broadcast %47 : vector<1x256xf32> to vector<8x256xf32>
    %49 = arith.mulf %46, %48 : vector<8x256xf32>
    %c0_20 = arith.constant 0 : index
    %c5 = arith.constant 5 : index
    %50 = vector.load %arg5[%c0_20, %c5] : memref<8x25xf32, #tpu.memory_space<vmem>>, vector<8x1xf32>
    %51 = vector.broadcast %50 : vector<8x1xf32> to vector<8x256xf32>
    %52 = arith.mulf %11, %51 : vector<8x256xf32>
    %c0_21 = arith.constant 0 : index
    %c6 = arith.constant 6 : index
    %53 = vector.load %arg5[%c0_21, %c6] : memref<8x25xf32, #tpu.memory_space<vmem>>, vector<8x1xf32>
    %54 = vector.broadcast %53 : vector<8x1xf32> to vector<8x256xf32>
    %55 = arith.mulf %15, %54 : vector<8x256xf32>
    %c0_22 = arith.constant 0 : index
    %c7 = arith.constant 7 : index
    %56 = vector.load %arg5[%c0_22, %c7] : memref<8x25xf32, #tpu.memory_space<vmem>>, vector<8x1xf32>
    %57 = vector.broadcast %56 : vector<8x1xf32> to vector<8x256xf32>
    %58 = arith.mulf %18, %57 : vector<8x256xf32>
    %c0_23 = arith.constant 0 : index
    %c8 = arith.constant 8 : index
    %59 = vector.load %arg5[%c0_23, %c8] : memref<8x25xf32, #tpu.memory_space<vmem>>, vector<8x1xf32>
    %60 = vector.broadcast %59 : vector<8x1xf32> to vector<8x256xf32>
    %61 = arith.mulf %22, %60 : vector<8x256xf32>
    %c0_24 = arith.constant 0 : index
    %c9 = arith.constant 9 : index
    %62 = vector.load %arg5[%c0_24, %c9] : memref<8x25xf32, #tpu.memory_space<vmem>>, vector<8x1xf32>
    %63 = vector.broadcast %62 : vector<8x1xf32> to vector<8x256xf32>
    %64 = arith.mulf %26, %63 : vector<8x256xf32>
    %65 = arith.addf %52, %55 : vector<8x256xf32>
    %66 = arith.addf %58, %61 : vector<8x256xf32>
    %67 = arith.addf %65, %66 : vector<8x256xf32>
    %68 = arith.addf %67, %64 : vector<8x256xf32>
    %c32_i32 = arith.constant 32 : i32
    %69 = tpu.dynamic_rotate %68 by %c32_i32 dim 1 : vector<8x256xf32>, i32 -> vector<8x256xf32>
    %c1_25 = arith.constant 1 : index
    %c0_26 = arith.constant 0 : index
    %70 = vector.load %arg3[%c1_25, %c0_26] : memref<5x256xf32, #tpu.memory_space<vmem>>, vector<1x256xf32>
    %71 = vector.broadcast %70 : vector<1x256xf32> to vector<8x256xf32>
    %72 = arith.mulf %69, %71 : vector<8x256xf32>
    %c0_27 = arith.constant 0 : index
    %c10 = arith.constant 10 : index
    %73 = vector.load %arg5[%c0_27, %c10] : memref<8x25xf32, #tpu.memory_space<vmem>>, vector<8x1xf32>
    %74 = vector.broadcast %73 : vector<8x1xf32> to vector<8x256xf32>
    %75 = arith.mulf %11, %74 : vector<8x256xf32>
    %c0_28 = arith.constant 0 : index
    %c11 = arith.constant 11 : index
    %76 = vector.load %arg5[%c0_28, %c11] : memref<8x25xf32, #tpu.memory_space<vmem>>, vector<8x1xf32>
    %77 = vector.broadcast %76 : vector<8x1xf32> to vector<8x256xf32>
    %78 = arith.mulf %15, %77 : vector<8x256xf32>
    %c0_29 = arith.constant 0 : index
    %c12 = arith.constant 12 : index
    %79 = vector.load %arg5[%c0_29, %c12] : memref<8x25xf32, #tpu.memory_space<vmem>>, vector<8x1xf32>
    %80 = vector.broadcast %79 : vector<8x1xf32> to vector<8x256xf32>
    %81 = arith.mulf %18, %80 : vector<8x256xf32>
    %c0_30 = arith.constant 0 : index
    %c13 = arith.constant 13 : index
    %82 = vector.load %arg5[%c0_30, %c13] : memref<8x25xf32, #tpu.memory_space<vmem>>, vector<8x1xf32>
    %83 = vector.broadcast %82 : vector<8x1xf32> to vector<8x256xf32>
    %84 = arith.mulf %22, %83 : vector<8x256xf32>
    %c0_31 = arith.constant 0 : index
    %c14 = arith.constant 14 : index
    %85 = vector.load %arg5[%c0_31, %c14] : memref<8x25xf32, #tpu.memory_space<vmem>>, vector<8x1xf32>
    %86 = vector.broadcast %85 : vector<8x1xf32> to vector<8x256xf32>
    %87 = arith.mulf %26, %86 : vector<8x256xf32>
    %88 = arith.addf %75, %78 : vector<8x256xf32>
    %89 = arith.addf %81, %84 : vector<8x256xf32>
    %90 = arith.addf %88, %89 : vector<8x256xf32>
    %91 = arith.addf %90, %87 : vector<8x256xf32>
    %c2_32 = arith.constant 2 : index
    %c0_33 = arith.constant 0 : index
    %92 = vector.load %arg3[%c2_32, %c0_33] : memref<5x256xf32, #tpu.memory_space<vmem>>, vector<1x256xf32>
    %93 = vector.broadcast %92 : vector<1x256xf32> to vector<8x256xf32>
    %94 = arith.mulf %91, %93 : vector<8x256xf32>
    %c0_34 = arith.constant 0 : index
    %c15 = arith.constant 15 : index
    %95 = vector.load %arg5[%c0_34, %c15] : memref<8x25xf32, #tpu.memory_space<vmem>>, vector<8x1xf32>
    %96 = vector.broadcast %95 : vector<8x1xf32> to vector<8x256xf32>
    %97 = arith.mulf %11, %96 : vector<8x256xf32>
    %c0_35 = arith.constant 0 : index
    %c16 = arith.constant 16 : index
    %98 = vector.load %arg5[%c0_35, %c16] : memref<8x25xf32, #tpu.memory_space<vmem>>, vector<8x1xf32>
    %99 = vector.broadcast %98 : vector<8x1xf32> to vector<8x256xf32>
    %100 = arith.mulf %15, %99 : vector<8x256xf32>
    %c0_36 = arith.constant 0 : index
    %c17 = arith.constant 17 : index
    %101 = vector.load %arg5[%c0_36, %c17] : memref<8x25xf32, #tpu.memory_space<vmem>>, vector<8x1xf32>
    %102 = vector.broadcast %101 : vector<8x1xf32> to vector<8x256xf32>
    %103 = arith.mulf %18, %102 : vector<8x256xf32>
    %c0_37 = arith.constant 0 : index
    %c18 = arith.constant 18 : index
    %104 = vector.load %arg5[%c0_37, %c18] : memref<8x25xf32, #tpu.memory_space<vmem>>, vector<8x1xf32>
    %105 = vector.broadcast %104 : vector<8x1xf32> to vector<8x256xf32>
    %106 = arith.mulf %22, %105 : vector<8x256xf32>
    %c0_38 = arith.constant 0 : index
    %c19 = arith.constant 19 : index
    %107 = vector.load %arg5[%c0_38, %c19] : memref<8x25xf32, #tpu.memory_space<vmem>>, vector<8x1xf32>
    %108 = vector.broadcast %107 : vector<8x1xf32> to vector<8x256xf32>
    %109 = arith.mulf %26, %108 : vector<8x256xf32>
    %110 = arith.addf %97, %100 : vector<8x256xf32>
    %111 = arith.addf %103, %106 : vector<8x256xf32>
    %112 = arith.addf %110, %111 : vector<8x256xf32>
    %113 = arith.addf %112, %109 : vector<8x256xf32>
    %c224_i32 = arith.constant 224 : i32
    %114 = tpu.dynamic_rotate %113 by %c224_i32 dim 1 : vector<8x256xf32>, i32 -> vector<8x256xf32>
    %c3_39 = arith.constant 3 : index
    %c0_40 = arith.constant 0 : index
    %115 = vector.load %arg3[%c3_39, %c0_40] : memref<5x256xf32, #tpu.memory_space<vmem>>, vector<1x256xf32>
    %116 = vector.broadcast %115 : vector<1x256xf32> to vector<8x256xf32>
    %117 = arith.mulf %114, %116 : vector<8x256xf32>
    %c0_41 = arith.constant 0 : index
    %c20 = arith.constant 20 : index
    %118 = vector.load %arg5[%c0_41, %c20] : memref<8x25xf32, #tpu.memory_space<vmem>>, vector<8x1xf32>
    %119 = vector.broadcast %118 : vector<8x1xf32> to vector<8x256xf32>
    %120 = arith.mulf %11, %119 : vector<8x256xf32>
    %c0_42 = arith.constant 0 : index
    %c21 = arith.constant 21 : index
    %121 = vector.load %arg5[%c0_42, %c21] : memref<8x25xf32, #tpu.memory_space<vmem>>, vector<8x1xf32>
    %122 = vector.broadcast %121 : vector<8x1xf32> to vector<8x256xf32>
    %123 = arith.mulf %15, %122 : vector<8x256xf32>
    %c0_43 = arith.constant 0 : index
    %c22 = arith.constant 22 : index
    %124 = vector.load %arg5[%c0_43, %c22] : memref<8x25xf32, #tpu.memory_space<vmem>>, vector<8x1xf32>
    %125 = vector.broadcast %124 : vector<8x1xf32> to vector<8x256xf32>
    %126 = arith.mulf %18, %125 : vector<8x256xf32>
    %c0_44 = arith.constant 0 : index
    %c23 = arith.constant 23 : index
    %127 = vector.load %arg5[%c0_44, %c23] : memref<8x25xf32, #tpu.memory_space<vmem>>, vector<8x1xf32>
    %128 = vector.broadcast %127 : vector<8x1xf32> to vector<8x256xf32>
    %129 = arith.mulf %22, %128 : vector<8x256xf32>
    %c0_45 = arith.constant 0 : index
    %c24 = arith.constant 24 : index
    %130 = vector.load %arg5[%c0_45, %c24] : memref<8x25xf32, #tpu.memory_space<vmem>>, vector<8x1xf32>
    %131 = vector.broadcast %130 : vector<8x1xf32> to vector<8x256xf32>
    %132 = arith.mulf %26, %131 : vector<8x256xf32>
    %133 = arith.addf %120, %123 : vector<8x256xf32>
    %134 = arith.addf %126, %129 : vector<8x256xf32>
    %135 = arith.addf %133, %134 : vector<8x256xf32>
    %136 = arith.addf %135, %132 : vector<8x256xf32>
    %c192_i32 = arith.constant 192 : i32
    %137 = tpu.dynamic_rotate %136 by %c192_i32 dim 1 : vector<8x256xf32>, i32 -> vector<8x256xf32>
    %c4_46 = arith.constant 4 : index
    %c0_47 = arith.constant 0 : index
    %138 = vector.load %arg3[%c4_46, %c0_47] : memref<5x256xf32, #tpu.memory_space<vmem>>, vector<1x256xf32>
    %139 = vector.broadcast %138 : vector<1x256xf32> to vector<8x256xf32>
    %140 = arith.mulf %137, %139 : vector<8x256xf32>
    %141 = arith.addf %49, %72 : vector<8x256xf32>
    %142 = arith.addf %94, %117 : vector<8x256xf32>
    %143 = arith.addf %141, %142 : vector<8x256xf32>
    %144 = arith.addf %143, %140 : vector<8x256xf32>
    %c0_48 = arith.constant 0 : index
    %c0_49 = arith.constant 0 : index
    %145 = vector.load %arg6[%c0_48, %c0_49] : memref<8x8xf32, #tpu.memory_space<vmem>>, vector<8x8xf32>
    %cst_50 = arith.constant dense<0.000000e+00> : vector<8x256xf32>
    %146 = tpu.matmul %145, %144, %cst_50 {dimension_numbers = #tpu.dot_dimension_numbers<[1], [0], [0], [1], [0, 0, 1, 1], [], []>} : vector<8x8xf32>, vector<8x256xf32>, vector<8x256xf32> -> vector<8x256xf32>
    %c0_51 = arith.constant 0 : index
    %147 = arith.index_cast %1 : i32 to index
    %148 = vector.load %arg9[%c0_51, %147] : memref<8x512xf32, #tpu.memory_space<vmem>>, vector<8x256xf32>
    tpu.vector_store %arg9[%c0_51, %147], %146 {strides = array<i32>} : memref<8x512xf32, #tpu.memory_space<vmem>>, vector<8x256xf32>,
    %c0_52 = arith.constant 0 : index
    %c0_53 = arith.constant 0 : index
    %149 = vector.load %arg10[%c0_52, %c0_53] : memref<8x1xf32, #tpu.memory_space<vmem>>, vector<8x1xf32>
    %cst_54 = arith.constant dense<0.000000e+00> : vector<8xf32>
    %150 = vector.multi_reduction <add>, %146, %cst_54 [1] : vector<8x256xf32> to vector<8xf32>
    %151 = vector.shape_cast %150 : vector<8xf32> to vector<8x1xf32>
    %152 = arith.addf %149, %151 : vector<8x1xf32>
    %c0_55 = arith.constant 0 : index
    %c0_56 = arith.constant 0 : index
    %153 = vector.load %arg10[%c0_55, %c0_56] : memref<8x1xf32, #tpu.memory_space<vmem>>, vector<8x1xf32>
    tpu.vector_store %arg10[%c0_55, %c0_56], %152 {strides = array<i32>} : memref<8x1xf32, #tpu.memory_space<vmem>>, vector<8x1xf32>,
    %c0_57 = arith.constant 0 : index
    %c0_58 = arith.constant 0 : index
    %154 = vector.load %arg11[%c0_57, %c0_58] : memref<8x1xf32, #tpu.memory_space<vmem>>, vector<8x1xf32>
    %155 = arith.mulf %146, %146 : vector<8x256xf32>
    %cst_59 = arith.constant dense<0.000000e+00> : vector<8xf32>
    %156 = vector.multi_reduction <add>, %155, %cst_59 [1] : vector<8x256xf32> to vector<8xf32>
    %157 = vector.shape_cast %156 : vector<8xf32> to vector<8x1xf32>
    %158 = arith.addf %154, %157 : vector<8x1xf32>
    %c0_60 = arith.constant 0 : index
    %c0_61 = arith.constant 0 : index
    %159 = vector.load %arg11[%c0_60, %c0_61] : memref<8x1xf32, #tpu.memory_space<vmem>>, vector<8x1xf32>
    tpu.vector_store %arg11[%c0_60, %c0_61], %158 {strides = array<i32>} : memref<8x1xf32, #tpu.memory_space<vmem>>, vector<8x1xf32>,
    %c0_62 = arith.constant 0 : index
    %c0_63 = arith.constant 0 : index
    %160 = vector.load %arg2[%c0_62, %c0_63] : memref<16x256xf32, #tpu.memory_space<vmem>>, vector<16x256xf32>
    %c0_64 = arith.constant 0 : index
    %161 = arith.index_cast %1 : i32 to index
    %162 = vector.load %arg8[%c0_64, %161] : memref<16x512xf32, #tpu.memory_space<vmem>>, vector<16x256xf32>
    tpu.vector_store %arg8[%c0_64, %161], %160 {strides = array<i32>} : memref<16x512xf32, #tpu.memory_space<vmem>>, vector<16x256xf32>,
    %c1_i32 = arith.constant 1 : i32
    %163 = arith.cmpi eq, %arg0, %c1_i32 : i32
    %164 = arith.extui %163 : i1 to i32
    %c0_i32_65 = arith.constant 0 : i32
    %165 = arith.cmpi ne, %164, %c0_i32_65 : i32
    scf.if %165 {
      %c0_66 = arith.constant 0 : index
      %c0_67 = arith.constant 0 : index
      %166 = vector.load %arg10[%c0_66, %c0_67] : memref<8x1xf32, #tpu.memory_space<vmem>>, vector<8x1xf32>
      %cst_68 = arith.constant 0.001953125 : f32
      %167 = vector.broadcast %cst_68 : f32 to vector<8x1xf32>
      %168 = arith.mulf %166, %167 : vector<8x1xf32>
      %c0_69 = arith.constant 0 : index
      %c0_70 = arith.constant 0 : index
      %169 = vector.load %arg11[%c0_69, %c0_70] : memref<8x1xf32, #tpu.memory_space<vmem>>, vector<8x1xf32>
      %cst_71 = arith.constant 0.001953125 : f32
      %170 = vector.broadcast %cst_71 : f32 to vector<8x1xf32>
      %171 = arith.mulf %169, %170 : vector<8x1xf32>
      %172 = arith.mulf %168, %168 : vector<8x1xf32>
      %173 = arith.subf %171, %172 : vector<8x1xf32>
      %c0_72 = arith.constant 0 : index
      %c0_73 = arith.constant 0 : index
      %174 = vector.load %arg7[%c0_72, %c0_73] : memref<1x1xf32, #tpu.memory_space<vmem>>, vector<1x1xf32>
      %cst_74 = arith.constant 9.99999974E-6 : f32
      %175 = vector.broadcast %cst_74 : f32 to vector<8x1xf32>
      %176 = arith.addf %173, %175 : vector<8x1xf32>
      %177 = math.rsqrt %176 : vector<8x1xf32>
      %178 = vector.broadcast %174 : vector<1x1xf32> to vector<8x1xf32>
      %179 = arith.mulf %178, %177 : vector<8x1xf32>
      %c0_75 = arith.constant 0 : index
      %c0_76 = arith.constant 0 : index
      %180 = vector.load %arg9[%c0_75, %c0_76] : memref<8x512xf32, #tpu.memory_space<vmem>>, vector<8x512xf32>
      %181 = vector.broadcast %168 : vector<8x1xf32> to vector<8x512xf32>
      %182 = arith.subf %180, %181 : vector<8x512xf32>
      %183 = vector.broadcast %179 : vector<8x1xf32> to vector<8x512xf32>
      %184 = arith.mulf %182, %183 : vector<8x512xf32>
      %185 = vector.extract_strided_slice %184 {offsets = [0, 0], sizes = [4, 512], strides = [1, 1]} : vector<8x512xf32> to vector<4x512xf32>
      %c0_77 = arith.constant 0 : index
      %c0_78 = arith.constant 0 : index
      %186 = vector.load %arg8[%c0_77, %c0_78] : memref<16x512xf32, #tpu.memory_space<vmem>>, vector<4x512xf32>
      tpu.vector_store %arg8[%c0_77, %c0_78], %185 {strides = array<i32>} : memref<16x512xf32, #tpu.memory_space<vmem>>, vector<4x512xf32>,
    } else {
    }
    return
  }
  func.func @transform_0(%arg0: i32) -> (i32, i32) {
    %c0_i32 = arith.constant 0 : i32
    %c0_i32_0 = arith.constant 0 : i32
    return %c0_i32, %arg0 : i32, i32
  }
  func.func @transform_1(%arg0: i32) -> (i32, i32) {
    %c0_i32 = arith.constant 0 : i32
    %c0_i32_0 = arith.constant 0 : i32
    return %c0_i32, %arg0 : i32, i32
  }
  func.func @transform_2(%arg0: i32) -> (i32, i32) {
    %c0_i32 = arith.constant 0 : i32
    %c0_i32_0 = arith.constant 0 : i32
    %c0_i32_1 = arith.constant 0 : i32
    return %c0_i32, %c0_i32_0 : i32, i32
  }
  func.func @transform_3(%arg0: i32) -> (i32, i32) {
    %c0_i32 = arith.constant 0 : i32
    %c0_i32_0 = arith.constant 0 : i32
    %c0_i32_1 = arith.constant 0 : i32
    return %c0_i32, %c0_i32_0 : i32, i32
  }
  func.func @transform_4(%arg0: i32) -> (i32, i32) {
    %c0_i32 = arith.constant 0 : i32
    %c0_i32_0 = arith.constant 0 : i32
    %c0_i32_1 = arith.constant 0 : i32
    return %c0_i32, %c0_i32_0 : i32, i32
  }
  func.func @transform_5(%arg0: i32) -> (i32, i32) {
    %c0_i32 = arith.constant 0 : i32
    %c0_i32_0 = arith.constant 0 : i32
    %c0_i32_1 = arith.constant 0 : i32
    return %c0_i32, %c0_i32_0 : i32, i32
  }
  func.func @transform_6(%arg0: i32) -> (i32, i32) {
    %c0_i32 = arith.constant 0 : i32
    %c0_i32_0 = arith.constant 0 : i32
    %c0_i32_1 = arith.constant 0 : i32
    return %c0_i32, %c0_i32_0 : i32, i32
  }
  func.func @transform_7(%arg0: i32) -> (i32, i32) {
    %c0_i32 = arith.constant 0 : i32
    %c0_i32_0 = arith.constant 0 : i32
    %c0_i32_1 = arith.constant 0 : i32
    return %c0_i32, %c0_i32_0 : i32, i32
  }
}

</mosaic_0001>

<llo_original>
// kernel: tpu_custom_call.1
$region0: #{tpu_custom_call.1}
  #allocation0 [shape = 'u32[]', space=smem, size = 0x4, offset = 0x4, fixed_abs, tag = 'smem constant byte address 0x4 - core index']
  #allocation1 [shape = 'u32[72,128]{1,0:T(1,128)}', space=vmem, size = 0x9000, scoped, tag = 'internal scratch']
  #allocation2 [shape = 'f32[8,512]{1,0:T(8,128)}', space=vmem, size = 0x4000, scoped, tag = 'scratch operand']
  #allocation3 [shape = 'f32[8,1]{1,0:T(8,128)}', space=vmem, size = 0x1000, scoped, tag = 'scratch operand']
  #allocation4 [shape = 'f32[8,1]{1,0:T(8,128)}', space=vmem, size = 0x1000, scoped, tag = 'scratch operand']
  #allocation5 [shape = 'f32[1,1]{1,0:T(1,128)S(1)}', space=vmem, size = 0x200, scoped, tag = 'scoped memory for tpu_custom_call.1']
  %s0 = inlined_call_operand.hbm [shape: f32[8,512], index: 0, kind: input, shape index: {}]
  %s1 = inlined_call_operand.hbm [shape: f32[16,512], index: 1, kind: input, shape index: {}]
  %s2 = inlined_call_operand.hbm [shape: f32[5,256], index: 2, kind: input, shape index: {}]
  %s3 = inlined_call_operand.hbm [shape: f32[5,256], index: 3, kind: input, shape index: {}]
  %s4 = inlined_call_operand.hbm [shape: f32[8,25], index: 4, kind: input, shape index: {}]
  %s5 = inlined_call_operand.hbm [shape: f32[8,8], index: 5, kind: input, shape index: {}]
  %s6 = inlined_call_operand.<no memory space> [shape: f32[1,1], index: 6, kind: input, shape index: {}]
  %s7 = inlined_call_operand.hbm [shape: f32[16,512], index: 7, kind: output, shape index: {}]
  %s8 = sld [smem:[#allocation0]]
  $region93: #{tpu_custom_call.1} parent=0
    _
  %s10 = ssub.s32 1, %s8
  %s11 = scalar_select 0, %s10, %s8
  %v12 = vstv %s6
  %13 = vst [vmem:[#allocation5] sm:$0x1] %v12
  $region1: #{tpu_custom_call.1} parent=0
    #allocation6 [shape = 'u8[16384]{0}', space=vmem, size = 0x4000, scoped, tag = 'input window, operand 0']
    #allocation7 [shape = 's32[2]{0}', space=sflag, size = 0x8, scoped, tag = 'scoped memory for tpu_custom_call.1']
    #allocation8 [shape = 's32[2]{0}', space=sflag, size = 0x8, scoped, tag = 'scoped memory for tpu_custom_call.1']
    #allocation9 [shape = 'u8[32768]{0}', space=vmem, size = 0x8000, scoped, tag = 'input window, operand 1']
    #allocation10 [shape = 's32[2]{0}', space=sflag, size = 0x8, scoped, tag = 'scoped memory for tpu_custom_call.1']
    #allocation11 [shape = 'u8[8192]{0}', space=vmem, size = 0x2000, scoped, tag = 'input window, operand 2, single buffered']
    #allocation12 [shape = 'u8[8192]{0}', space=vmem, size = 0x2000, scoped, tag = 'input window, operand 3, single buffered']
    #allocation13 [shape = 's32[1]{0}', space=sflag, size = 0x4, scoped, tag = 'scoped memory for tpu_custom_call.1']
    #allocation14 [shape = 'u8[4096]{0}', space=vmem, size = 0x1000, scoped, tag = 'input window, operand 4, single buffered']
    #allocation15 [shape = 'u8[4096]{0}', space=vmem, size = 0x1000, scoped, tag = 'input window, operand 5, single buffered']
    #allocation16 [shape = 's32[1]{0}', space=sflag, size = 0x4, scoped, tag = 'scoped memory for tpu_custom_call.1']
    #allocation17 [shape = 'u8[32768]{0}', space=vmem, size = 0x8000, scoped, tag = 'output window, operand 0, single buffered']
    %14 = vsyncpa [#allocation7], 0
    %s15 = scalar_lea.sflag [#allocation7], 1
    %16 = vsyncpa %s15, 0
    %17 = vsyncpa [#allocation10], 0
    %s18 = scalar_lea.sflag [#allocation10], 1
    %19 = vsyncpa %s18, 0
    %20 = vsyncpa [#allocation13], 0
    %21 = vsyncpa [#allocation16], 0
    %22 = vsyncpa [#allocation8], 0
    loop: start=0, step=1, limit=4
    $region2: #{tpu_custom_call.1} parent=1 // loop_pre_header
      _
    $region3: #{tpu_custom_call.1} parent=1 // loop_header
      %s24 = sphi 0, %s28
      %p25 = scmp.ge.s32.totalorder %s24, 4
      %s34 = sphi 0, %s36
      %s37 = sphi 0, %s34
      %s38 = sphi 0, %s37
      %s54 = sphi 0, %s38
      %s60 = sphi 0, %s62
      %s63 = sphi 0, %s60
      %s64 = sphi 0, %s63
      %s80 = sphi 0, %s64
      %s84 = sphi 0, %s84
      %s86 = sphi 0, %s84
      %s87 = sphi 0, %s86
      %s101 = sphi 0, %s87
      %s105 = sphi 0, %s105
      %s107 = sphi 0, %s105
      %s108 = sphi 0, %s107
      %s122 = sphi 0, %s108
      %s126 = sphi 0, %s126
      %s128 = sphi 0, %s126
      %s129 = sphi 0, %s128
      %s143 = sphi 0, %s129
      %s147 = sphi 0, %s147
      %s149 = sphi 0, %s147
      %s150 = sphi 0, %s149
      %s164 = sphi 0, %s150
      %s168 = sphi 0, %s168
      %s170 = sphi 0, %s168
      %s171 = sphi 0, %s170
      %s185 = sphi 0, %s171
      %s189 = sphi 0, %s189
      %s191 = sphi 0, %s189
      %s192 = sphi 0, %s191
      %s206 = sphi 0, %s192
    $region4: #{tpu_custom_call.1} parent=1 // loop_header_branch
      %27 = sbr.rel (%p25) target = $region8
    $region5: #{tpu_custom_call.1} parent=1 // loop_body
      %s29 = ssub.s32 %s24, 1
      %s30 = ssub.s32 %s24, 2
      %s31 = sadd.s32 %s24, 1
      %s32 = ssub.s32 %s24, %s31
      %p33 = scmp.eq.s32.totalorder %s32, 0
      %s35 = sadd.s32 %s34, 1
      %s36 = scalar_select %p33, %s34, %s35
      %p39 = pneg %p33
      %p40 = scmp.eq.s32.totalorder %s24, 1
      %p41 = por %p39, %p40
      %p42 = scmp.ne.s32.totalorder %s34, %s37
      %p43 = scmp.eq.s32.totalorder %s24, 0
      %p44 = por %p42, %p43
      %p45 = scmp.ne.s32.totalorder %s34, %s37
      %p46 = scmp.eq.s32.totalorder %s29, 1
      %p47 = por %p45, %p46
      %p48 = scmp.ne.s32.totalorder %s37, %s38
      %p49 = scmp.eq.s32.totalorder %s29, 0
      %p50 = por %p48, %p49
      %p51 = scmp.ne.s32.totalorder %s37, %s38
      %p52 = scmp.eq.s32.totalorder %s30, 1
      %p53 = por %p51, %p52
      %p55 = scmp.ne.s32.totalorder %s38, %s54
      %p56 = scmp.eq.s32.totalorder %s30, 0
      %p57 = por %p55, %p56
      %s58 = ssub.s32 %s24, %s31
      %p59 = scmp.eq.s32.totalorder %s58, 0
      %s61 = sadd.s32 %s60, 1
      %s62 = scalar_select %p59, %s60, %s61
      %p65 = pneg %p59
      %p66 = scmp.eq.s32.totalorder %s24, 1
      %p67 = por %p65, %p66
      %p68 = scmp.ne.s32.totalorder %s60, %s63
      %p69 = scmp.eq.s32.totalorder %s24, 0
      %p70 = por %p68, %p69
      %p71 = scmp.ne.s32.totalorder %s60, %s63
      %p72 = scmp.eq.s32.totalorder %s29, 1
      %p73 = por %p71, %p72
      %p74 = scmp.ne.s32.totalorder %s63, %s64
      %p75 = scmp.eq.s32.totalorder %s29, 0
      %p76 = por %p74, %p75
      %p77 = scmp.ne.s32.totalorder %s63, %s64
      %p78 = scmp.eq.s32.totalorder %s30, 1
      %p79 = por %p77, %p78
      %p81 = scmp.ne.s32.totalorder %s64, %s80
      %p82 = scmp.eq.s32.totalorder %s30, 0
      %p83 = por %p81, %p82
      %s85 = sadd.s32 %s84, 1
      %p88 = scmp.eq.s32.totalorder %s24, 1
      %p89 = scmp.ne.s32.totalorder %s84, %s86
      %p90 = scmp.eq.s32.totalorder %s24, 0
      %p91 = por %p89, %p90
      %p92 = scmp.ne.s32.totalorder %s84, %s86
      %p93 = scmp.eq.s32.totalorder %s29, 1
      %p94 = por %p92, %p93
      %p95 = scmp.ne.s32.totalorder %s86, %s87
      %p96 = scmp.eq.s32.totalorder %s29, 0
      %p97 = por %p95, %p96
      %p98 = scmp.ne.s32.totalorder %s86, %s87
      %p99 = scmp.eq.s32.totalorder %s30, 1
      %p100 = por %p98, %p99
      %p102 = scmp.ne.s32.totalorder %s87, %s101
      %p103 = scmp.eq.s32.totalorder %s30, 0
      %p104 = por %p102, %p103
      %s106 = sadd.s32 %s105, 1
      %p109 = scmp.eq.s32.totalorder %s24, 1
      %p110 = scmp.ne.s32.totalorder %s105, %s107
      %p111 = scmp.eq.s32.totalorder %s24, 0
      %p112 = por %p110, %p111
      %p113 = scmp.ne.s32.totalorder %s105, %s107
      %p114 = scmp.eq.s32.totalorder %s29, 1
      %p115 = por %p113, %p114
      %p116 = scmp.ne.s32.totalorder %s107, %s108
      %p117 = scmp.eq.s32.totalorder %s29, 0
      %p118 = por %p116, %p117
      %p119 = scmp.ne.s32.totalorder %s107, %s108
      %p120 = scmp.eq.s32.totalorder %s30, 1
      %p121 = por %p119, %p120
      %p123 = scmp.ne.s32.totalorder %s108, %s122
      %p124 = scmp.eq.s32.totalorder %s30, 0
      %p125 = por %p123, %p124
      %s127 = sadd.s32 %s126, 1
      %p130 = scmp.eq.s32.totalorder %s24, 1
      %p131 = scmp.ne.s32.totalorder %s126, %s128
      %p132 = scmp.eq.s32.totalorder %s24, 0
      %p133 = por %p131, %p132
      %p134 = scmp.ne.s32.totalorder %s126, %s128
      %p135 = scmp.eq.s32.totalorder %s29, 1
      %p136 = por %p134, %p135
      %p137 = scmp.ne.s32.totalorder %s128, %s129
      %p138 = scmp.eq.s32.totalorder %s29, 0
      %p139 = por %p137, %p138
      %p140 = scmp.ne.s32.totalorder %s128, %s129
      %p141 = scmp.eq.s32.totalorder %s30, 1
      %p142 = por %p140, %p141
      %p144 = scmp.ne.s32.totalorder %s129, %s143
      %p145 = scmp.eq.s32.totalorder %s30, 0
      %p146 = por %p144, %p145
      %s148 = sadd.s32 %s147, 1
      %p151 = scmp.eq.s32.totalorder %s24, 1
      %p152 = scmp.ne.s32.totalorder %s147, %s149
      %p153 = scmp.eq.s32.totalorder %s24, 0
      %p154 = por %p152, %p153
      %p155 = scmp.ne.s32.totalorder %s147, %s149
      %p156 = scmp.eq.s32.totalorder %s29, 1
      %p157 = por %p155, %p156
      %p158 = scmp.ne.s32.totalorder %s149, %s150
      %p159 = scmp.eq.s32.totalorder %s29, 0
      %p160 = por %p158, %p159
      %p161 = scmp.ne.s32.totalorder %s149, %s150
      %p162 = scmp.eq.s32.totalorder %s30, 1
      %p163 = por %p161, %p162
      %p165 = scmp.ne.s32.totalorder %s150, %s164
      %p166 = scmp.eq.s32.totalorder %s30, 0
      %p167 = por %p165, %p166
      %s169 = sadd.s32 %s168, 1
      %p172 = scmp.eq.s32.totalorder %s24, 1
      %p173 = scmp.ne.s32.totalorder %s168, %s170
      %p174 = scmp.eq.s32.totalorder %s24, 0
      %p175 = por %p173, %p174
      %p176 = scmp.ne.s32.totalorder %s168, %s170
      %p177 = scmp.eq.s32.totalorder %s29, 1
      %p178 = por %p176, %p177
      %p179 = scmp.ne.s32.totalorder %s170, %s171
      %p180 = scmp.eq.s32.totalorder %s29, 0
      %p181 = por %p179, %p180
      %p182 = scmp.ne.s32.totalorder %s170, %s171
      %p183 = scmp.eq.s32.totalorder %s30, 1
      %p184 = por %p182, %p183
      %p186 = scmp.ne.s32.totalorder %s171, %s185
      %p187 = scmp.eq.s32.totalorder %s30, 0
      %p188 = por %p186, %p187
      %s190 = sadd.s32 %s189, 1
      %p193 = scmp.eq.s32.totalorder %s24, 1
      %p194 = scmp.ne.s32.totalorder %s189, %s191
      %p195 = scmp.eq.s32.totalorder %s24, 0
      %p196 = por %p194, %p195
      %p197 = scmp.ne.s32.totalorder %s189, %s191
      %p198 = scmp.eq.s32.totalorder %s29, 1
      %p199 = por %p197, %p198
      %p200 = scmp.ne.s32.totalorder %s191, %s192
      %p201 = scmp.eq.s32.totalorder %s29, 0
      %p202 = por %p200, %p201
      %p203 = scmp.ne.s32.totalorder %s191, %s192
      %p204 = scmp.eq.s32.totalorder %s30, 1
      %p205 = por %p203, %p204
      %p207 = scmp.ne.s32.totalorder %s192, %s206
      %p208 = scmp.eq.s32.totalorder %s30, 0
      %p209 = por %p207, %p208
      %p210 = scmp.le.s32.totalorder 1, %s24
      %p211 = scmp.lt.s32.totalorder %s24, 3
      %p212 = pnand %p210, %p211
      %p213 = pneg %p212
      // Predicated region
      $region9: #{tpu_custom_call.1} parent=5 // pred_check
        _
      $region10: #{tpu_custom_call.1} parent=5 // pred_check_branch
        %215 = sbr.rel (%p212) target = $region12
      $region11: #{tpu_custom_call.1} parent=5 // pred_region
        %s216 = ssub.s32 %s24, 1
        // Predicated region
        $region13: #{tpu_custom_call.1} parent=11 // pred_check
          %p217 = pneg %p97
        $region14: #{tpu_custom_call.1} parent=11 // pred_check_branch
          %219 = sbr.rel (%p217) target = $region16
        $region15: #{tpu_custom_call.1} parent=11 // pred_region
          %221 = vsyncadd [#allocation10], 0
          %s223 = sshll.u32 %s2, 4
          %s224 = int_to_ptr.hbm [resolvable:$true] %s223
          %s225 = sshll.u32 [#allocation11], 4
          %s226 = int_to_ptr.vmem [resolvable:$true] %s225
          %228 = dma.hbm_to_vmem [thread:$0]  %s224, 256, %s226, [#allocation10]
        $region16: #{tpu_custom_call.1} parent=11 // pred_fallthru
          _
        // Predicated region
        $region17: #{tpu_custom_call.1} parent=11 // pred_check
          %p229 = pneg %p118
        $region18: #{tpu_custom_call.1} parent=11 // pred_check_branch
          %231 = sbr.rel (%p229) target = $region20
        $region19: #{tpu_custom_call.1} parent=11 // pred_region
          %233 = vsyncadd [#allocation13], 0
          %s235 = sshll.u32 %s3, 4
          %s236 = int_to_ptr.hbm [resolvable:$true] %s235
          %s237 = sshll.u32 [#allocation12], 4
          %s238 = int_to_ptr.vmem [resolvable:$true] %s237
          %240 = dma.hbm_to_vmem [thread:$0]  %s236, 256, %s238, [#allocation13]
        $region20: #{tpu_custom_call.1} parent=11 // pred_fallthru
          _
        // Predicated region
        $region21: #{tpu_custom_call.1} parent=11 // pred_check
          %p241 = pneg %p139
        $region22: #{tpu_custom_call.1} parent=11 // pred_check_branch
          %243 = sbr.rel (%p241) target = $region24
        $region23: #{tpu_custom_call.1} parent=11 // pred_region
          %245 = vsyncadd [#allocation13], 0
          %s247 = sshll.u32 %s4, 4
          %s248 = int_to_ptr.hbm [resolvable:$true] %s247
          %s249 = sshll.u32 [#allocation14], 4
          %s250 = int_to_ptr.vmem [resolvable:$true] %s249
          %252 = dma.hbm_to_vmem [thread:$0]  %s248, 128, %s250, [#allocation13]
        $region24: #{tpu_custom_call.1} parent=11 // pred_fallthru
          _
        // Predicated region
        $region25: #{tpu_custom_call.1} parent=11 // pred_check
          %p253 = pneg %p160
        $region26: #{tpu_custom_call.1} parent=11 // pred_check_branch
          %255 = sbr.rel (%p253) target = $region28
        $region27: #{tpu_custom_call.1} parent=11 // pred_region
          %257 = vsyncadd [#allocation16], 0
          %s259 = sshll.u32 %s5, 4
          %s260 = int_to_ptr.hbm [resolvable:$true] %s259
          %s261 = sshll.u32 [#allocation15], 4
          %s262 = int_to_ptr.vmem [resolvable:$true] %s261
          %264 = dma.hbm_to_vmem [thread:$0]  %s260, 128, %s262, [#allocation16]
        $region28: #{tpu_custom_call.1} parent=11 // pred_fallthru
          _
        // Predicated region
        $region29: #{tpu_custom_call.1} parent=11 // pred_check
          %p265 = pneg %p181
        $region30: #{tpu_custom_call.1} parent=11 // pred_check_branch
          %267 = sbr.rel (%p265) target = $region32
        $region31: #{tpu_custom_call.1} parent=11 // pred_region
          _
        $region32: #{tpu_custom_call.1} parent=11 // pred_fallthru
          _
      $region12: #{tpu_custom_call.1} parent=5 // pred_fallthru
        _
      %p268 = scmp.lt.s32.totalorder %s24, 2
      // Predicated region
      $region33: #{tpu_custom_call.1} parent=5 // pred_check
        %p269 = pneg %p268
      $region34: #{tpu_custom_call.1} parent=5 // pred_check_branch
        %271 = sbr.rel (%p269) target = $region36
      $region35: #{tpu_custom_call.1} parent=5 // pred_region
        // Predicated region
        $region37: #{tpu_custom_call.1} parent=35 // pred_check
          %p272 = pneg %p44
        $region38: #{tpu_custom_call.1} parent=35 // pred_check_branch
          %274 = sbr.rel (%p272) target = $region40
        $region39: #{tpu_custom_call.1} parent=35 // pred_region
          %s275 = sand.u32 %s34, 1
          %s276 = scalar_lea.sflag [#allocation7], %s275
          %s277 = sand.u32 %s34, 1
          %s278 = smul.addr %s277, 16
          %s279 = scalar_lea.vmem [#allocation6], %s278
          %s280 = smul.u32 2, %s24
          %282 = vsyncadd %s276, 0
          %s283 = smul.addr %s280, 8
          %s284 = scalar_lea.hbm %s0, %s283
          %s286 = sshll.u32 %s284, 4
          %s287 = int_to_ptr.hbm [resolvable:$true] %s286
          %s288 = sshll.u32 %s279, 4
          %s289 = int_to_ptr.vmem [resolvable:$true] %s288
          %291 = dma.hbm_to_vmem [thread:$0]  %s287, 256, %s289, %s276
        $region40: #{tpu_custom_call.1} parent=35 // pred_fallthru
          _
        // Predicated region
        $region41: #{tpu_custom_call.1} parent=35 // pred_check
          %p292 = pneg %p70
        $region42: #{tpu_custom_call.1} parent=35 // pred_check_branch
          %294 = sbr.rel (%p292) target = $region44
        $region43: #{tpu_custom_call.1} parent=35 // pred_region
          %s295 = sand.u32 %s24, 1
          %s296 = scalar_lea.sflag [#allocation10], %s295
          %s297 = sand.u32 %s60, 1
          %s298 = smul.addr %s297, 32
          %s299 = scalar_lea.vmem [#allocation9], %s298
          %s300 = smul.u32 2, %s24
          %302 = vsyncadd %s296, 0
          %s303 = smul.addr %s300, 8
          %s304 = scalar_lea.hbm %s1, %s303
          %s305 = sshll.u32 %s304, 4
          %s306 = int_to_ptr.hbm [resolvable:$true] %s305
          %s307 = sshll.u32 %s299, 4
          %s308 = int_to_ptr.vmem [resolvable:$true] %s307
          %313 = dma.hbm_to_vmem [thread:$0]  %s306, 512, %s308, %s296, 512, 256, 16
        $region44: #{tpu_custom_call.1} parent=35 // pred_fallthru
          _
      $region36: #{tpu_custom_call.1} parent=5 // pred_fallthru
        _
      %p314 = scmp.le.s32.totalorder 1, %s24
      %p315 = scmp.lt.s32.totalorder %s24, 3
      %p316 = pnand %p314, %p315
      %p317 = pneg %p316
      // Predicated region
      $region45: #{tpu_custom_call.1} parent=5 // pred_check
        _
      $region46: #{tpu_custom_call.1} parent=5 // pred_check_branch
        %319 = sbr.rel (%p316) target = $region48
      $region47: #{tpu_custom_call.1} parent=5 // pred_region
        %s320 = ssub.s32 %s24, 1
        %s321 = sand.u32 %s37, 1
        %s322 = scalar_lea.sflag [#allocation7], %s321
        %s323 = sand.u32 %s37, 1
        %s324 = smul.addr %s323, 16
        %s325 = scalar_lea.vmem [#allocation6], %s324
        // Predicated region
        $region49: #{tpu_custom_call.1} parent=47 // pred_check
          %p326 = pneg %p50
        $region50: #{tpu_custom_call.1} parent=47 // pred_check_branch
          %328 = sbr.rel (%p326) target = $region52
        $region51: #{tpu_custom_call.1} parent=47 // pred_region
          %330 = dma.done %s322, 256
        $region52: #{tpu_custom_call.1} parent=47 // pred_fallthru
          _
        %s331 = sand.u32 %s29, 1
        %s332 = scalar_lea.sflag [#allocation10], %s331
        %s333 = sand.u32 %s63, 1
        %s334 = smul.addr %s333, 32
        %s335 = scalar_lea.vmem [#allocation9], %s334
        // Predicated region
        $region53: #{tpu_custom_call.1} parent=47 // pred_check
          %p336 = pneg %p76
        $region54: #{tpu_custom_call.1} parent=47 // pred_check_branch
          %338 = sbr.rel (%p336) target = $region56
        $region55: #{tpu_custom_call.1} parent=47 // pred_region
          %340 = dma.done %s332, 512
        $region56: #{tpu_custom_call.1} parent=47 // pred_fallthru
          _
        // Predicated region
        $region57: #{tpu_custom_call.1} parent=47 // pred_check
          %p341 = pneg %p97
        $region58: #{tpu_custom_call.1} parent=47 // pred_check_branch
          %343 = sbr.rel (%p341) target = $region60
        $region59: #{tpu_custom_call.1} parent=47 // pred_region
          %345 = dma.done [#allocation10], 256
        $region60: #{tpu_custom_call.1} parent=47 // pred_fallthru
          _
        // Predicated region
        $region61: #{tpu_custom_call.1} parent=47 // pred_check
          %p346 = pneg %p118
        $region62: #{tpu_custom_call.1} parent=47 // pred_check_branch
          %348 = sbr.rel (%p346) target = $region64
        $region63: #{tpu_custom_call.1} parent=47 // pred_region
          %350 = dma.done [#allocation13], 256
        $region64: #{tpu_custom_call.1} parent=47 // pred_fallthru
          _
        // Predicated region
        $region65: #{tpu_custom_call.1} parent=47 // pred_check
          %p351 = pneg %p139
        $region66: #{tpu_custom_call.1} parent=47 // pred_check_branch
          %353 = sbr.rel (%p351) target = $region68
        $region67: #{tpu_custom_call.1} parent=47 // pred_region
          %355 = dma.done [#allocation13], 128
        $region68: #{tpu_custom_call.1} parent=47 // pred_fallthru
          _
        // Predicated region
        $region69: #{tpu_custom_call.1} parent=47 // pred_check
          %p356 = pneg %p160
        $region70: #{tpu_custom_call.1} parent=47 // pred_check_branch
          %358 = sbr.rel (%p356) target = $region72
        $region71: #{tpu_custom_call.1} parent=47 // pred_region
          %360 = dma.done [#allocation16], 128
        $region72: #{tpu_custom_call.1} parent=47 // pred_fallthru
          _
        %s361 = sand.u32 %s37, 1
        %s362 = scalar_lea.sflag [#allocation7], %s361
        %s363 = sand.u32 %s37, 1
        %s364 = smul.addr %s363, 16
        %s365 = scalar_lea.vmem [#allocation6], %s364
        %p366 = pneg %p50
        %p367 = pneg %p47
        %s368 = sand.u32 %s29, 1
        %s369 = scalar_lea.sflag [#allocation10], %s368
        %s370 = sand.u32 %s63, 1
        %s371 = smul.addr %s370, 32
        %s372 = scalar_lea.vmem [#allocation9], %s371
        %p373 = pneg %p76
        %p374 = pneg %p73
        %p375 = pneg %p97
        %p376 = pneg %p94
        %p377 = pneg %p118
        %p378 = pneg %p115
        %p379 = pneg %p139
        %p380 = pneg %p136
        %p381 = pneg %p160
        %p382 = pneg %p157
        %p383 = pneg %p181
        %p384 = pneg %p178
        %p385 = pneg %p202
        %p386 = pneg %p199
        %s387 = smul.u32 2, %s29
        %s388 = smul.u32 2, %s29
        %s389 = smul.u32 %s29, 256
        %p390 = scmp.eq.s32.totalorder %s29, 0
        // Predicated region
        $region73: #{tpu_custom_call.1} parent=47 // pred_check
          %p391 = pneg %p390
        $region74: #{tpu_custom_call.1} parent=47 // pred_check_branch
          %393 = sbr.rel (%p391) target = $region76
        $region75: #{tpu_custom_call.1} parent=47 // pred_region
          %vm394 = vcmask 7168
          %395 = vst.msk [vmem:[#allocation3] sm:$0xff] %vm394, 0.0
          %396 = vst.msk [vmem:[#allocation4] sm:$0xff] %vm394, 0.0
        $region76: #{tpu_custom_call.1} parent=47 // pred_fallthru
          _
        %v397 = vld [vmem:[%s325] sm:$0xff]
        %v398 = vld [vmem:[%s325 + $0x8] sm:$0xff]
        %v399 = vmax.f32 %v397, 0.0
        %v400 = vmax.f32 %v398, 0.0
        %401 = vrot.lane.b32.xlu0 %v399, 4
        %v402 = vpop.permute.xlu0 %401
        %403 = vrot.lane.b32.xlu0 %v400, 4
        %v404 = vpop.permute.xlu0 %403
        %v405 = vlaneseq
        %v406 = vand.u32 %v405, 127
        %vm407 = vcmp.lt.s32.totalorder %v406, 4
        %v408 = vsel %vm407, %v402, %v404
        %v409 = vsel %vm407, %v404, %v402
        %v410 = vld [vmem:[#allocation12] ss:$8 sm:$0x3]
        %v412 = vperm.slane %v410, 0
        %v413 = vperm.slane %v410, 1
        %v416 = vmul.f32 %v409, %v412
        %v417 = vmul.f32 %v408, %v413
        %418 = vrot.lane.b32.xlu0 %v399, 2
        %v419 = vpop.permute.xlu0 %418
        %420 = vrot.lane.b32.xlu0 %v400, 2
        %v421 = vpop.permute.xlu0 %420
        %vm422 = vcmp.lt.s32.totalorder %v406, 2
        %v423 = vsel %vm422, %v419, %v421
        %v424 = vsel %vm422, %v421, %v419
        %s425 = scalar_lea.vmem [#allocation12], 1
        %v426 = vld [vmem:[%s425] ss:$8 sm:$0x3]
        %v428 = vperm.slane %v426, 0
        %v429 = vperm.slane %v426, 1
        %v432 = vmul.f32 %v424, %v428
        %v433 = vmul.f32 %v423, %v429
        %s434 = scalar_lea.vmem [#allocation12], 2
        %v435 = vld [vmem:[%s434] ss:$8 sm:$0x3]
        %v437 = vperm.slane %v435, 0
        %v438 = vperm.slane %v435, 1
        %v441 = vmul.f32 %v399, %v437
        %v442 = vmul.f32 %v400, %v438
        %443 = vrot.lane.b32.xlu0 %v399, 126
        %v444 = vpop.permute.xlu0 %443
        %445 = vrot.lane.b32.xlu0 %v400, 126
        %v446 = vpop.permute.xlu0 %445
        %vm447 = vcmp.lt.s32.totalorder %v406, 126
        %v448 = vsel %vm447, %v444, %v446
        %v449 = vsel %vm447, %v446, %v444
        %s450 = scalar_lea.vmem [#allocation12], 3
        %v451 = vld [vmem:[%s450] ss:$8 sm:$0x3]
        %v453 = vperm.slane %v451, 0
        %v454 = vperm.slane %v451, 1
        %v457 = vmul.f32 %v448, %v453
        %v458 = vmul.f32 %v449, %v454
        %459 = vrot.lane.b32.xlu0 %v399, 124
        %v460 = vpop.permute.xlu0 %459
        %461 = vrot.lane.b32.xlu0 %v400, 124
        %v462 = vpop.permute.xlu0 %461
        %vm463 = vcmp.lt.s32.totalorder %v406, 124
        %v464 = vsel %vm463, %v460, %v462
        %v465 = vsel %vm463, %v462, %v460
        %s466 = scalar_lea.vmem [#allocation12], 4
        %v467 = vld [vmem:[%s466] ss:$8 sm:$0x3]
        %v469 = vperm.slane %v467, 0
        %v470 = vperm.slane %v467, 1
        %v473 = vmul.f32 %v464, %v469
        %v474 = vmul.f32 %v465, %v470
        %v475 = vld [vmem:[#allocation14] sm:$0xff]
        %477 = vset.pattern.permute.xlu0 0
        %478 = vperm.xlu0 %477, %v475
        %v479 = vpop.permute.xlu0 %478
        %v481 = vmul.f32 %v416, %v479
        %v482 = vmul.f32 %v417, %v479
        %483 = vset.pattern.permute.xlu0 1
        %484 = vperm.xlu0 %483, %v475
        %v485 = vpop.permute.xlu0 %484
        %v487 = vmul.f32 %v432, %v485
        %v488 = vmul.f32 %v433, %v485
        %489 = vset.pattern.permute.xlu0 2
        %490 = vperm.xlu0 %489, %v475
        %v491 = vpop.permute.xlu0 %490
        %v493 = vmul.f32 %v441, %v491
        %v494 = vmul.f32 %v442, %v491
        %495 = vset.pattern.permute.xlu0 3
        %496 = vperm.xlu0 %495, %v475
        %v497 = vpop.permute.xlu0 %496
        %v499 = vmul.f32 %v457, %v497
        %v500 = vmul.f32 %v458, %v497
        %501 = vset.pattern.permute.xlu0 4
        %502 = vperm.xlu0 %501, %v475
        %v503 = vpop.permute.xlu0 %502
        %v505 = vmul.f32 %v473, %v503
        %v506 = vmul.f32 %v474, %v503
        %v507 = vadd.f32 %v481, %v487
        %v508 = vadd.f32 %v482, %v488
        %v509 = vadd.f32 %v493, %v499
        %v510 = vadd.f32 %v494, %v500
        %v511 = vadd.f32 %v507, %v509
        %v512 = vadd.f32 %v508, %v510
        %v513 = vadd.f32 %v511, %v505
        %v514 = vadd.f32 %v512, %v506
        %515 = vrot.lane.b32.xlu0 %v513, 64
        %v516 = vpop.permute.xlu0 %515
        %517 = vrot.lane.b32.xlu0 %v514, 64
        %v518 = vpop.permute.xlu0 %517
        %vm519 = vcmp.lt.s32.totalorder %v406, 64
        %v520 = vsel %vm519, %v516, %v518
        %v521 = vsel %vm519, %v518, %v516
        %v522 = vld [vmem:[#allocation11] ss:$8 sm:$0x3]
        %v524 = vperm.slane %v522, 0
        %v525 = vperm.slane %v522, 1
        %v528 = vmul.f32 %v521, %v524
        %v529 = vmul.f32 %v520, %v525
        %530 = vset.pattern.permute.xlu0 5
        %531 = vperm.xlu0 %530, %v475
        %v532 = vpop.permute.xlu0 %531
        %v534 = vmul.f32 %v416, %v532
        %v535 = vmul.f32 %v417, %v532
        %536 = vset.pattern.permute.xlu0 6
        %537 = vperm.xlu0 %536, %v475
        %v538 = vpop.permute.xlu0 %537
        %v540 = vmul.f32 %v432, %v538
        %v541 = vmul.f32 %v433, %v538
        %542 = vset.pattern.permute.xlu0 7
        %543 = vperm.xlu0 %542, %v475
        %v544 = vpop.permute.xlu0 %543
        %v546 = vmul.f32 %v441, %v544
        %v547 = vmul.f32 %v442, %v544
        %548 = vset.pattern.permute.xlu0 8
        %549 = vperm.xlu0 %548, %v475
        %v550 = vpop.permute.xlu0 %549
        %v552 = vmul.f32 %v457, %v550
        %v553 = vmul.f32 %v458, %v550
        %554 = vset.pattern.permute.xlu0 9
        %555 = vperm.xlu0 %554, %v475
        %v556 = vpop.permute.xlu0 %555
        %v558 = vmul.f32 %v473, %v556
        %v559 = vmul.f32 %v474, %v556
        %v560 = vadd.f32 %v534, %v540
        %v561 = vadd.f32 %v535, %v541
        %v562 = vadd.f32 %v546, %v552
        %v563 = vadd.f32 %v547, %v553
        %v564 = vadd.f32 %v560, %v562
        %v565 = vadd.f32 %v561, %v563
        %v566 = vadd.f32 %v564, %v558
        %v567 = vadd.f32 %v565, %v559
        %568 = vrot.lane.b32.xlu0 %v566, 32
        %v569 = vpop.permute.xlu0 %568
        %570 = vrot.lane.b32.xlu0 %v567, 32
        %v571 = vpop.permute.xlu0 %570
        %vm572 = vcmp.lt.s32.totalorder %v406, 32
        %v573 = vsel %vm572, %v569, %v571
        %v574 = vsel %vm572, %v571, %v569
        %s575 = scalar_lea.vmem [#allocation11], 1
        %v576 = vld [vmem:[%s575] ss:$8 sm:$0x3]
        %v578 = vperm.slane %v576, 0
        %v579 = vperm.slane %v576, 1
        %v582 = vmul.f32 %v574, %v578
        %v583 = vmul.f32 %v573, %v579
        %584 = vset.pattern.permute.xlu0 10
        %585 = vperm.xlu0 %584, %v475
        %v586 = vpop.permute.xlu0 %585
        %v588 = vmul.f32 %v416, %v586
        %v589 = vmul.f32 %v417, %v586
        %590 = vset.pattern.permute.xlu0 11
        %591 = vperm.xlu0 %590, %v475
        %v592 = vpop.permute.xlu0 %591
        %v594 = vmul.f32 %v432, %v592
        %v595 = vmul.f32 %v433, %v592
        %596 = vset.pattern.permute.xlu0 12
        %597 = vperm.xlu0 %596, %v475
        %v598 = vpop.permute.xlu0 %597
        %v600 = vmul.f32 %v441, %v598
        %v601 = vmul.f32 %v442, %v598
        %602 = vset.pattern.permute.xlu0 13
        %603 = vperm.xlu0 %602, %v475
        %v604 = vpop.permute.xlu0 %603
        %v606 = vmul.f32 %v457, %v604
        %v607 = vmul.f32 %v458, %v604
        %608 = vset.pattern.permute.xlu0 14
        %609 = vperm.xlu0 %608, %v475
        %v610 = vpop.permute.xlu0 %609
        %v612 = vmul.f32 %v473, %v610
        %v613 = vmul.f32 %v474, %v610
        %v614 = vadd.f32 %v588, %v594
        %v615 = vadd.f32 %v589, %v595
        %v616 = vadd.f32 %v600, %v606
        %v617 = vadd.f32 %v601, %v607
        %v618 = vadd.f32 %v614, %v616
        %v619 = vadd.f32 %v615, %v617
        %v620 = vadd.f32 %v618, %v612
        %v621 = vadd.f32 %v619, %v613
        %s622 = scalar_lea.vmem [#allocation11], 2
        %v623 = vld [vmem:[%s622] ss:$8 sm:$0x3]
        %v625 = vperm.slane %v623, 0
        %v626 = vperm.slane %v623, 1
        %v629 = vmul.f32 %v620, %v625
        %v630 = vmul.f32 %v621, %v626
        %631 = vset.pattern.permute.xlu0 15
        %632 = vperm.xlu0 %631, %v475
        %v633 = vpop.permute.xlu0 %632
        %v635 = vmul.f32 %v416, %v633
        %v636 = vmul.f32 %v417, %v633
        %637 = vset.pattern.permute.xlu0 16
        %638 = vperm.xlu0 %637, %v475
        %v639 = vpop.permute.xlu0 %638
        %v641 = vmul.f32 %v432, %v639
        %v642 = vmul.f32 %v433, %v639
        %643 = vset.pattern.permute.xlu0 17
        %644 = vperm.xlu0 %643, %v475
        %v645 = vpop.permute.xlu0 %644
        %v647 = vmul.f32 %v441, %v645
        %v648 = vmul.f32 %v442, %v645
        %649 = vset.pattern.permute.xlu0 18
        %650 = vperm.xlu0 %649, %v475
        %v651 = vpop.permute.xlu0 %650
        %v653 = vmul.f32 %v457, %v651
        %v654 = vmul.f32 %v458, %v651
        %655 = vset.pattern.permute.xlu0 19
        %656 = vperm.xlu0 %655, %v475
        %v657 = vpop.permute.xlu0 %656
        %v659 = vmul.f32 %v473, %v657
        %v660 = vmul.f32 %v474, %v657
        %v661 = vadd.f32 %v635, %v641
        %v662 = vadd.f32 %v636, %v642
        %v663 = vadd.f32 %v647, %v653
        %v664 = vadd.f32 %v648, %v654
        %v665 = vadd.f32 %v661, %v663
        %v666 = vadd.f32 %v662, %v664
        %v667 = vadd.f32 %v665, %v659
        %v668 = vadd.f32 %v666, %v660
        %669 = vrot.lane.b32.xlu0 %v667, 96
        %v670 = vpop.permute.xlu0 %669
        %671 = vrot.lane.b32.xlu0 %v668, 96
        %v672 = vpop.permute.xlu0 %671
        %vm673 = vcmp.lt.s32.totalorder %v406, 96
        %v674 = vsel %vm673, %v670, %v672
        %v675 = vsel %vm673, %v672, %v670
        %s676 = scalar_lea.vmem [#allocation11], 3
        %v677 = vld [vmem:[%s676] ss:$8 sm:$0x3]
        %v679 = vperm.slane %v677, 0
        %v680 = vperm.slane %v677, 1
        %v683 = vmul.f32 %v674, %v679
        %v684 = vmul.f32 %v675, %v680
        %685 = vset.pattern.permute.xlu0 20
        %686 = vperm.xlu0 %685, %v475
        %v687 = vpop.permute.xlu0 %686
        %v689 = vmul.f32 %v416, %v687
        %v690 = vmul.f32 %v417, %v687
        %691 = vset.pattern.permute.xlu0 21
        %692 = vperm.xlu0 %691, %v475
        %v693 = vpop.permute.xlu0 %692
        %v695 = vmul.f32 %v432, %v693
        %v696 = vmul.f32 %v433, %v693
        %697 = vset.pattern.permute.xlu0 22
        %698 = vperm.xlu0 %697, %v475
        %v699 = vpop.permute.xlu0 %698
        %v701 = vmul.f32 %v441, %v699
        %v702 = vmul.f32 %v442, %v699
        %703 = vset.pattern.permute.xlu0 23
        %704 = vperm.xlu0 %703, %v475
        %v705 = vpop.permute.xlu0 %704
        %v707 = vmul.f32 %v457, %v705
        %v708 = vmul.f32 %v458, %v705
        %709 = vset.pattern.permute.xlu0 24
        %710 = vperm.xlu0 %709, %v475
        %v711 = vpop.permute.xlu0 %710
        %v713 = vmul.f32 %v473, %v711
        %v714 = vmul.f32 %v474, %v711
        %v715 = vadd.f32 %v689, %v695
        %v716 = vadd.f32 %v690, %v696
        %v717 = vadd.f32 %v701, %v707
        %v718 = vadd.f32 %v702, %v708
        %v719 = vadd.f32 %v715, %v717
        %v720 = vadd.f32 %v716, %v718
        %v721 = vadd.f32 %v719, %v713
        %v722 = vadd.f32 %v720, %v714
        %723 = vrot.lane.b32.xlu0 %v721, 64
        %v724 = vpop.permute.xlu0 %723
        %725 = vrot.lane.b32.xlu0 %v722, 64
        %v726 = vpop.permute.xlu0 %725
        %v727 = vsel %vm519, %v724, %v726
        %v728 = vsel %vm519, %v726, %v724
        %s729 = scalar_lea.vmem [#allocation11], 4
        %v730 = vld [vmem:[%s729] ss:$8 sm:$0x3]
        %v732 = vperm.slane %v730, 0
        %v733 = vperm.slane %v730, 1
        %v736 = vmul.f32 %v727, %v732
        %v737 = vmul.f32 %v728, %v733
        %v738 = vadd.f32 %v528, %v582
        %v739 = vadd.f32 %v529, %v583
        %v740 = vadd.f32 %v629, %v683
        %v741 = vadd.f32 %v630, %v684
        %v742 = vadd.f32 %v738, %v740
        %v743 = vadd.f32 %v739, %v741
        %v744 = vadd.f32 %v742, %v736
        %v745 = vadd.f32 %v743, %v737
        %v746 = vld [vmem:[#allocation15] sm:$0xff]
        %vm747 = vcmask 64512
        %v749 = vsel %vm747, %v746, 0
        %751 = vmatpush.msra.mxu0 0.0
        %752 = vmatpush.msra.mxu0 0.0
        %753 = vmatpush.msra.mxu0 0.0
        %754 = vmatpush.msra.mxu0 0.0
        %755 = vmatpush.msra.mxu0 0.0
        %756 = vmatpush.msra.mxu0 0.0
        %757 = vmatpush.msra.mxu0 0.0
        %758 = vmatpush.msra.mxu0 0.0
        %759 = vmatpush.msra.mxu0 0.0
        %760 = vmatpush.msra.mxu0 0.0
        %761 = vmatpush.msra.mxu0 0.0
        %762 = vmatpush.msra.mxu0 0.0
        %763 = vmatpush.msra.mxu0 0.0
        %764 = vmatpush.msra.mxu0 0.0
        %765 = vmatpush.msra.mxu0 0.0
        %766 = vmatpush.msra.mxu0 %v744
        %767 = vmatmul.f32.gmra.mxu0 %v749
        %v768 = vpop.f32.mrf.mxu0
        %v769 = vadd.f32 0.0, %v768
        %770 = vdwg.mxu0
        %771 = vmatpush.msra.mxu0 0.0
        %772 = vmatpush.msra.mxu0 0.0
        %773 = vmatpush.msra.mxu0 0.0
        %774 = vmatpush.msra.mxu0 0.0
        %775 = vmatpush.msra.mxu0 0.0
        %776 = vmatpush.msra.mxu0 0.0
        %777 = vmatpush.msra.mxu0 0.0
        %778 = vmatpush.msra.mxu0 0.0
        %779 = vmatpush.msra.mxu0 0.0
        %780 = vmatpush.msra.mxu0 0.0
        %781 = vmatpush.msra.mxu0 0.0
        %782 = vmatpush.msra.mxu0 0.0
        %783 = vmatpush.msra.mxu0 0.0
        %784 = vmatpush.msra.mxu0 0.0
        %785 = vmatpush.msra.mxu0 0.0
        %786 = vmatpush.msra.mxu0 %v745
        %787 = vmatmul.f32.gmra.mxu0 %v749
        %v788 = vpop.f32.mrf.mxu0
        %v789 = vadd.f32 0.0, %v788
        %790 = vdwg.mxu0
        %s791 = sshra.s32 %s389, 7
        %s792 = sand.u32 %s389, 127
        %s793 = smul.addr %s791, 8
        %s794 = scalar_lea.vmem [#allocation2], %s793
        %795 = vst [vmem:[%s794] sm:$0xff] %v769
        %796 = vst [vmem:[%s794 + $0x8] sm:$0xff] %v789
        %v797 = vld [vmem:[#allocation3] sm:$0xff]
        %v798 = vadd.f32 %v769, %v789
        %799 = vadd.xlane.f32.xlu0 %v798
        %v800 = vpop.xlane.xlu0 %799
        %v801 = vadd.f32 %v797, %v800
        %vm802 = vcmask 7168
        %803 = vst.msk [vmem:[#allocation3] sm:$0xff] %vm802, %v801
        %v804 = vld [vmem:[#allocation4] sm:$0xff]
        %v805 = vmul.f32 %v769, %v769
        %v806 = vmul.f32 %v789, %v789
        %v807 = vadd.f32 %v805, %v806
        %808 = vadd.xlane.f32.xlu0 %v807
        %v809 = vpop.xlane.xlu0 %808
        %v810 = vadd.f32 %v804, %v809
        %811 = vst.msk [vmem:[#allocation4] sm:$0xff] %vm802, %v810
        %v812 = vld [vmem:[%s335] sm:$0xff]
        %v813 = vld [vmem:[%s335 + $0x8] sm:$0xff]
        %v814 = vld [vmem:[%s335 + $0x10] sm:$0xff]
        %v815 = vld [vmem:[%s335 + $0x18] sm:$0xff]
        %s816 = smul.addr %s791, 8
        %s817 = scalar_lea.vmem [#allocation17], %s816
        %818 = vst [vmem:[%s817] sm:$0xff] %v812
        %819 = vst [vmem:[%s817 + $0x8] sm:$0xff] %v813
        %820 = vst [vmem:[%s817 + $0x20] sm:$0xff] %v814
        %821 = vst [vmem:[%s817 + $0x28] sm:$0xff] %v815
        %p822 = scmp.eq.s32.totalorder %s29, 1
        // Predicated region
        $region77: #{tpu_custom_call.1} parent=47 // pred_check
          %p823 = pneg %p822
        $region78: #{tpu_custom_call.1} parent=47 // pred_check_branch
          %825 = sbr.rel (%p823) target = $region80
        $region79: #{tpu_custom_call.1} parent=47 // pred_region
          %v826 = vld [vmem:[#allocation3] sm:$0xff]
          %v827 = vmul.f32 %v826, 0.001953125
          %v828 = vld [vmem:[#allocation4] sm:$0xff]
          %v829 = vmul.f32 %v828, 0.001953125
          %v830 = vmul.f32 %v827, %v827
          %v831 = vsub.f32 %v829, %v830
          %v832 = vld [vmem:[#allocation5] sm:$0x1]
          %v833 = vadd.f32 %v831, 1e-05
          %v834 = vrsqrt.pop %v833
          %v835 = vmul.f32 %v834, %v833
          %v836 = vmul.f32 %v835, %v834
          %v837 = vmul.f32 0.5, %v836
          %v838 = vsub.f32 1.5, %v837
          %v839 = vmul.f32 %v834, %v838
          %vm840 = vweird.f32 %v833
          %vm841 = vweird.f32 %v834
          %vm842 = vmor %vm840, %vm841
          %v843 = vsel %vm842, %v834, %v839
          %v845 = vperm.slane %v832, 0
          %v847 = vmul.f32 %v845, %v843
          %v848 = vld [vmem:[#allocation2] sm:$0xff]
          %v849 = vld [vmem:[#allocation2 + $0x8] sm:$0xff]
          %v850 = vld [vmem:[#allocation2 + $0x10] sm:$0xff]
          %v851 = vld [vmem:[#allocation2 + $0x18] sm:$0xff]
          %853 = vset.pattern.permute.xlu0 0
          %854 = vperm.xlu0 %853, %v827
          %v855 = vpop.permute.xlu0 %854
          %v857 = vsub.f32 %v848, %v855
          %v858 = vsub.f32 %v849, %v855
          %v859 = vsub.f32 %v850, %v855
          %v860 = vsub.f32 %v851, %v855
          %862 = vset.pattern.permute.xlu0 0
          %863 = vperm.xlu0 %862, %v847
          %v864 = vpop.permute.xlu0 %863
          %v866 = vmul.f32 %v857, %v864
          %v867 = vmul.f32 %v858, %v864
          %v868 = vmul.f32 %v859, %v864
          %v869 = vmul.f32 %v860, %v864
          %870 = vst [vmem:[#allocation17] sm:$0xf] %v866
          %871 = vst [vmem:[#allocation17 + $0x8] sm:$0xf] %v867
          %872 = vst [vmem:[#allocation17 + $0x10] sm:$0xf] %v868
          %873 = vst [vmem:[#allocation17 + $0x18] sm:$0xf] %v869
        $region80: #{tpu_custom_call.1} parent=47 // pred_fallthru
          _
        // Predicated region
        $region81: #{tpu_custom_call.1} parent=47 // pred_check
          %p874 = pneg %p199
        $region82: #{tpu_custom_call.1} parent=47 // pred_check_branch
          %876 = sbr.rel (%p874) target = $region84
        $region83: #{tpu_custom_call.1} parent=47 // pred_region
          %878 = vsyncadd [#allocation8], 0
          %s879 = sshll.u32 [#allocation17], 4
          %s880 = int_to_ptr.vmem [resolvable:$true] %s879
          %s881 = sshll.u32 %s7, 4
          %s882 = int_to_ptr.hbm [resolvable:$true] %s881
          %887 = dma.vmem_to_hbm [thread:$0]  %s880, 1024, %s882, [#allocation8], 512, 512, 32
        $region84: #{tpu_custom_call.1} parent=47 // pred_fallthru
          _
        // Predicated region
        $region85: #{tpu_custom_call.1} parent=47 // pred_check
          %p888 = pneg %p199
        $region86: #{tpu_custom_call.1} parent=47 // pred_check_branch
          %890 = sbr.rel (%p888) target = $region88
        $region87: #{tpu_custom_call.1} parent=47 // pred_region
          %892 = dma.done [#allocation8], 1024
        $region88: #{tpu_custom_call.1} parent=47 // pred_fallthru
          _
      $region48: #{tpu_custom_call.1} parent=5 // pred_fallthru
        _
      %p893 = scmp.le.s32.totalorder 2, %s24
      // Predicated region
      $region89: #{tpu_custom_call.1} parent=5 // pred_check
        %p894 = pneg %p893
      $region90: #{tpu_custom_call.1} parent=5 // pred_check_branch
        %896 = sbr.rel (%p894) target = $region92
      $region91: #{tpu_custom_call.1} parent=5 // pred_region
        %s897 = ssub.s32 %s24, 2
      $region92: #{tpu_custom_call.1} parent=5 // pred_fallthru
        _
    $region6: #{tpu_custom_call.1} parent=1 // loop_footer
      %s28 = sadd.s32 1, %s24
    $region7: #{tpu_custom_call.1} parent=1 // loop_footer_branch
      %23 = sbr.rel target = $region3
    $region8: #{tpu_custom_call.1} parent=1 // loop_exit
      _
    %898 = vsyncpa [#allocation7], 1
    %s899 = scalar_lea.sflag [#allocation7], 1
    %900 = vsyncpa %s899, 1
    %901 = vsyncpa [#allocation10], 1
    %s902 = scalar_lea.sflag [#allocation10], 1
    %903 = vsyncpa %s902, 1
    %904 = vsyncpa [#allocation13], 1
    %905 = vsyncpa [#allocation16], 1
    %906 = vsyncpa [#allocation8], 1
    %s907 = scalar_lea.sflag [#allocation8], 1
    %908 = vsyncpa %s907, 1

</llo_original>
